<compile_context>
chip_gen: v5e
topology: v5e:2x2
jax: 0.10.0
libtpu: 0.0.40
codegen_flags: <defaults>
</compile_context>

<pallas_src>
import functools

import jax
import jax.numpy as jnp
import numpy as np
from jax.experimental import pallas as pl
from jax.experimental.pallas import tpu as pltpu

# ----------------------------- model config ---------------------------------
HIDDEN = 10       # hidden_neurons
OUT = 6           # output_size
IN = 1            # scalar time input

# padded (TPU-tile-friendly) sizes
H_P = 16          # hidden padded to a sublane multiple (f32 sublane tile = 8)
O_P = 8           # output padded to a sublane multiple
PCOLS = H_P + 4   # packed-parameter block: [W2^T | W3^T] + 4 vector columns


# ------------------------------ Pallas kernel --------------------------------
def epinet_kernel(t_ref, p_ref, o_ref):
    # Batch-on-lanes layout:
    #   t_ref : (1, TN)             row of time samples (lanes = batch)
    #   p_ref : (2*H_P, PCOLS)      packed parameters, single DMA:
    #       [0:H_P,       0:H_P ]   = W2^T  (so that h2 = W2^T @ h1)
    #       [H_P:H_P+O_P, 0:H_P ]   = W3^T
    #       [0:H_P,       H_P+0 ]   = w1 column (Linear(1, H) weights)
    #       [0:H_P,       H_P+1 ]   = b1 column
    #       [0:H_P,       H_P+2 ]   = b2 column
    #       [0:O_P,       H_P+3 ]   = b3 column
    #   o_ref : (O_P, TN)           lane-dense output block
    t = t_ref[...]                                      # (1, TN)

    # Static ref slices -> zero-cost views, loaded directly.
    w1 = p_ref[0:H_P, H_P + 0:H_P + 1]                  # (H_P, 1)
    b1 = p_ref[0:H_P, H_P + 1:H_P + 2]                  # (H_P, 1)
    w2 = p_ref[0:H_P, 0:H_P]                            # (H_P, H_P)
    b2 = p_ref[0:H_P, H_P + 2:H_P + 3]                  # (H_P, 1)
    w3 = p_ref[H_P:H_P + O_P, 0:H_P]                    # (O_P, H_P)
    b3 = p_ref[0:O_P, H_P + 3:H_P + 4]                  # (O_P, 1)

    # Layer 1: K == 1, so no MXU needed -- pure VPU broadcast multiply.
    h1 = jnp.tanh(w1 * t + b1)                          # (H_P, TN)

    # Layer 2: small-K matmul; contraction over sublanes, lanes stay batch.
    h2 = jnp.tanh(
        jnp.dot(w2, h1, preferred_element_type=jnp.float32) + b2
    )                                                   # (H_P, TN)

    # Output layer.  sigmoid(z) = 0.5*(tanh(z/2)+1): one EUP tanh pass
    # instead of exp + full-precision divide.
    z = jnp.dot(w3, h2, preferred_element_type=jnp.float32) + b3   # (O_P, TN)
    o_ref[...] = 0.5 * jnp.tanh(0.5 * z) + 0.5


# ----------------------- one-time parameter packing --------------------------
def pack_params(params):
    """Re-layout (w1, b1, w2, b2, w3, b3) ONCE into the kernel's packed block.

    Weights use the (in_features, out_features) convention (x @ W).
    All padding is inert zeros.  Call this once, outside the hot path."""
    w1, b1, w2, b2, w3, b3 = params
    p = jnp.zeros((2 * H_P, PCOLS), jnp.float32)
    p = p.at[:HIDDEN, :HIDDEN].set(w2.T.astype(jnp.float32))          # W2^T
    p = p.at[H_P:H_P + OUT, :HIDDEN].set(w3.T.astype(jnp.float32))    # W3^T
    p = p.at[:HIDDEN, H_P + 0].set(w1.reshape(-1).astype(jnp.float32))
    p = p.at[:HIDDEN, H_P + 1].set(b1.astype(jnp.float32))
    p = p.at[:HIDDEN, H_P + 2].set(b2.astype(jnp.float32))
    p = p.at[:OUT, H_P + 3].set(b3.astype(jnp.float32))
    return p


# ------------------------------- hot path ------------------------------------
@functools.partial(jax.jit, static_argnames=("tn",))
def epinet_forward_lanes(t_row, packed, *, tn=None):
    """Hot-path forward.

    t_row : (1, n) f32 time samples (batch on lanes)
    packed: (2*H_P, PCOLS) f32 from pack_params
    returns (O_P, n) f32; rows OUT..O_P-1 are inert padding (=0.5)."""
    n = t_row.shape[1]
    if tn is None:
        # Overhead-bound at small N: one block.  At large N: 512-wide blocks,
        # >=2 steps, "parallel" grid so both v7x TensorCores get work.
        tn = n if n <= 1024 else 512
    grid = (pl.cdiv(n, tn),)
    return pl.pallas_call(
        epinet_kernel,
        out_shape=jax.ShapeDtypeStruct((O_P, n), jnp.float32),
        grid_spec=pltpu.PrefetchScalarGridSpec(
            num_scalar_prefetch=0,
            grid=grid,
            in_specs=[
                pl.BlockSpec((1, tn), lambda i: (0, i)),           # t (lanes)
                pl.BlockSpec((2 * H_P, PCOLS), lambda i: (0, 0)),  # params
            ],
            out_specs=pl.BlockSpec((O_P, tn), lambda i: (0, i)),
        ),
        compiler_params=pltpu.CompilerParams(
            dimension_semantics=("parallel",)
        ),
    )(t_row, packed)


def epinet_forward(t, packed):
    """PyTorch-compatible wrapper: (N, 1) -> (N, OUT).

    Prefer epinet_forward_lanes for hot paths -- the slice+transpose here is
    an extra kernel-sized XLA op on a latency-bound path."""
    t_row = t.astype(jnp.float32).reshape(1, -1)
    out = epinet_forward_lanes(t_row, packed)
    return out[:OUT].T


# ------------------------- deterministic param init --------------------------
def init_params(key):
    """Xavier-normal weights (gain = 5/3 for tanh), zero biases.

    Same distribution as the PyTorch init; exact values from
    torch.manual_seed(100) are not reproducible in JAX."""
    gain = 5.0 / 3.0  # nn.init.calculate_gain('tanh')

    def xavier(k, fan_in, fan_out):
        std = gain * np.sqrt(2.0 / (fan_in + fan_out))
        return std * jax.random.normal(k, (fan_in, fan_out), dtype=jnp.float32)

    k1, k2, k3 = jax.random.split(key, 3)
    w1 = xavier(k1, IN, HIDDEN)
    b1 = jnp.zeros((HIDDEN,), jnp.float32)
    w2 = xavier(k2, HIDDEN, HIDDEN)
    b2 = jnp.zeros((HIDDEN,), jnp.float32)
    w3 = xavier(k3, HIDDEN, OUT)
    b3 = jnp.zeros((OUT,), jnp.float32)
    return (w1, b1, w2, b2, w3, b3)


def reference_forward(t, params):
    w1, b1, w2, b2, w3, b3 = params
    h1 = jnp.tanh(t @ w1 + b1)
    h2 = jnp.tanh(h1 @ w2 + b2)
    return jax.nn.sigmoid(h2 @ w3 + b3)


# ---------------------------------- main -------------------------------------
if __name__ == "__main__":
    key = jax.random.PRNGKey(0)
    pkey, tkey = jax.random.split(key)

    params = init_params(pkey)
    packed = pack_params(params)      # one-time re-layout, out of the hot path

    # time grid like the spec: t = linspace(t0, tf, 1000), shape (N, 1)
    N = 1000
    t = jnp.linspace(0.0, 1.0, N, dtype=jnp.float32).reshape(N, 1)
    t = t + 0.01 * jax.random.normal(tkey, (N, 1), dtype=jnp.float32)

    ref = reference_forward(t, params)

    # Hot path: batch-on-lanes in/out, single block (N <= 1024), no re-layout.
    t_row = t.reshape(1, N)
    out_lanes = jax.block_until_ready(epinet_forward_lanes(t_row, packed))
    assert out_lanes.shape == (O_P, N)
    np.testing.assert_allclose(np.asarray(out_lanes[:OUT].T), np.asarray(ref),
                               rtol=1e-5, atol=1e-5)

    # Multi-step grid + ragged boundary block (tn=512 over N=1000).
    out_multi = jax.block_until_ready(
        epinet_forward_lanes(t_row, packed, tn=512))
    np.testing.assert_allclose(np.asarray(out_multi[:OUT].T), np.asarray(ref),
                               rtol=1e-5, atol=1e-5)

    # PyTorch-compatible (N, 1) -> (N, 6) wrapper.
    out = jax.block_until_ready(epinet_forward(t, packed))
    assert out.shape == (N, OUT)
    np.testing.assert_allclose(np.asarray(out), np.asarray(ref),
                               rtol=1e-5, atol=1e-5)

    print("KERNEL_OK")
</pallas_src>

<mosaic_0001>
module attributes {stable_mosaic.version = 11 : i64} {
  func.func @epinet_kernel(%arg0: i32, %arg1: memref<1x1000xf32, #tpu.memory_space<vmem>>, %arg2: memref<32x20xf32, #tpu.memory_space<vmem>>, %arg3: memref<8x1000xf32, #tpu.memory_space<vmem>>) attributes {dimension_semantics = [#tpu.dimension_semantics<parallel>], iteration_bounds = array<i64: 1>, scalar_prefetch = 0 : i64, scratch_operands = 0 : i64, tpu.core_type = #tpu.core_type<tc>, window_params = [{transform_indices = @transform_0, window_bounds = array<i64: 1, 1000>}, {pipeline_mode = #tpu.pipeline_mode<synchronous>, transform_indices = @transform_1, window_bounds = array<i64: 32, 20>}, {transform_indices = @transform_2, window_bounds = array<i64: 8, 1000>}]} {
    %c0 = arith.constant 0 : index
    %c0_0 = arith.constant 0 : index
    %0 = vector.load %arg1[%c0, %c0_0] : memref<1x1000xf32, #tpu.memory_space<vmem>>, vector<1x1000xf32>
    %c0_1 = arith.constant 0 : index
    %c16 = arith.constant 16 : index
    %1 = vector.load %arg2[%c0_1, %c16] : memref<32x20xf32, #tpu.memory_space<vmem>>, vector<16x1xf32>
    %c0_2 = arith.constant 0 : index
    %c17 = arith.constant 17 : index
    %2 = vector.load %arg2[%c0_2, %c17] : memref<32x20xf32, #tpu.memory_space<vmem>>, vector<16x1xf32>
    %c0_3 = arith.constant 0 : index
    %c0_4 = arith.constant 0 : index
    %3 = vector.load %arg2[%c0_3, %c0_4] : memref<32x20xf32, #tpu.memory_space<vmem>>, vector<16x16xf32>
    %c0_5 = arith.constant 0 : index
    %c18 = arith.constant 18 : index
    %4 = vector.load %arg2[%c0_5, %c18] : memref<32x20xf32, #tpu.memory_space<vmem>>, vector<16x1xf32>
    %c16_6 = arith.constant 16 : index
    %c0_7 = arith.constant 0 : index
    %5 = vector.load %arg2[%c16_6, %c0_7] : memref<32x20xf32, #tpu.memory_space<vmem>>, vector<8x16xf32>
    %c0_8 = arith.constant 0 : index
    %c19 = arith.constant 19 : index
    %6 = vector.load %arg2[%c0_8, %c19] : memref<32x20xf32, #tpu.memory_space<vmem>>, vector<8x1xf32>
    %7 = vector.broadcast %1 : vector<16x1xf32> to vector<16x1000xf32>
    %8 = vector.broadcast %0 : vector<1x1000xf32> to vector<16x1000xf32>
    %9 = arith.mulf %7, %8 : vector<16x1000xf32>
    %10 = vector.broadcast %2 : vector<16x1xf32> to vector<16x1000xf32>
    %11 = arith.addf %9, %10 : vector<16x1000xf32>
    %12 = math.tanh %11 : vector<16x1000xf32>
    %cst = arith.constant dense<0.000000e+00> : vector<16x1000xf32>
    %13 = tpu.matmul %3, %12, %cst {dimension_numbers = #tpu.dot_dimension_numbers<[1], [0], [0], [1], [0, 0, 1, 1], [], []>} : vector<16x16xf32>, vector<16x1000xf32>, vector<16x1000xf32> -> vector<16x1000xf32>
    %14 = vector.broadcast %4 : vector<16x1xf32> to vector<16x1000xf32>
    %15 = arith.addf %13, %14 : vector<16x1000xf32>
    %16 = math.tanh %15 : vector<16x1000xf32>
    %cst_9 = arith.constant dense<0.000000e+00> : vector<8x1000xf32>
    %17 = tpu.matmul %5, %16, %cst_9 {dimension_numbers = #tpu.dot_dimension_numbers<[1], [0], [0], [1], [0, 0, 1, 1], [], []>} : vector<8x16xf32>, vector<16x1000xf32>, vector<8x1000xf32> -> vector<8x1000xf32>
    %18 = vector.broadcast %6 : vector<8x1xf32> to vector<8x1000xf32>
    %19 = arith.addf %17, %18 : vector<8x1000xf32>
    %cst_10 = arith.constant 5.000000e-01 : f32
    %20 = vector.broadcast %cst_10 : f32 to vector<8x1000xf32>
    %21 = arith.mulf %20, %19 : vector<8x1000xf32>
    %22 = math.tanh %21 : vector<8x1000xf32>
    %cst_11 = arith.constant 5.000000e-01 : f32
    %23 = vector.broadcast %cst_11 : f32 to vector<8x1000xf32>
    %24 = arith.mulf %23, %22 : vector<8x1000xf32>
    %cst_12 = arith.constant 5.000000e-01 : f32
    %25 = vector.broadcast %cst_12 : f32 to vector<8x1000xf32>
    %26 = arith.addf %24, %25 : vector<8x1000xf32>
    %c0_13 = arith.constant 0 : index
    %c0_14 = arith.constant 0 : index
    %27 = vector.load %arg3[%c0_13, %c0_14] : memref<8x1000xf32, #tpu.memory_space<vmem>>, vector<8x1000xf32>
    tpu.vector_store %arg3[%c0_13, %c0_14], %26 {strides = array<i32>} : memref<8x1000xf32, #tpu.memory_space<vmem>>, vector<8x1000xf32>,
    return
  }
  func.func @transform_0(%arg0: i32) -> (i32, i32) {
    %c0_i32 = arith.constant 0 : i32
    %c0_i32_0 = arith.constant 0 : i32
    return %c0_i32, %arg0 : i32, i32
  }
  func.func @transform_1(%arg0: i32) -> (i32, i32) {
    %c0_i32 = arith.constant 0 : i32
    %c0_i32_0 = arith.constant 0 : i32
    %c0_i32_1 = arith.constant 0 : i32
    return %c0_i32, %c0_i32_0 : i32, i32
  }
  func.func @transform_2(%arg0: i32) -> (i32, i32) {
    %c0_i32 = arith.constant 0 : i32
    %c0_i32_0 = arith.constant 0 : i32
    return %c0_i32, %arg0 : i32, i32
  }
}

</mosaic_0001>

<llo_original>
// kernel: epinet_forward_lanes.1
$region0: #{epinet_forward_lanes.1}
  #allocation0 [shape = 'u32[]', space=smem, size = 0x4, offset = 0x4, fixed_abs, tag = 'smem constant byte address 0x4 - core index']
  #allocation1 [shape = 'u32[72,128]{1,0:T(1,128)}', space=vmem, size = 0x9000, scoped, tag = 'internal scratch']
  %s0 = inlined_call_operand.vmem [shape: f32[1,1000], index: 0, kind: input, shape index: {}]
  %s1 = inlined_call_operand.vmem [shape: f32[32,20], index: 1, kind: input, shape index: {}]
  %s2 = inlined_call_operand.hbm [shape: f32[8,1000], index: 2, kind: output, shape index: {}]
  %s3 = sld [smem:[#allocation0]]
  $region18: #{epinet_forward_lanes.1} parent=0
    _
  %s5 = ssub.s32 1, %s3
  %s6 = scalar_select 0, %s5, %s3
  $region1: #{epinet_forward_lanes.1} parent=0
    #allocation2 [shape = 'u8[32768]{0}', space=vmem, size = 0x8000, scoped, tag = 'output window, operand 0, single buffered']
    #allocation3 [shape = 's32[1]{0}', space=sflag, size = 0x4, scoped, tag = 'scoped memory for epinet_forward_lanes.1']
    %7 = vsyncpa [#allocation3], 0
    // Predicated region
    $region2: #{epinet_forward_lanes.1} parent=1 // pred_check
      _
    $region3: #{epinet_forward_lanes.1} parent=1 // pred_check_branch
      %9 = sbr.rel (0) target = $region5
    $region4: #{epinet_forward_lanes.1} parent=1 // pred_region
      _
    $region5: #{epinet_forward_lanes.1} parent=1 // pred_fallthru
      _
    // Predicated region
    $region6: #{epinet_forward_lanes.1} parent=1 // pred_check
      _
    $region7: #{epinet_forward_lanes.1} parent=1 // pred_check_branch
      %11 = sbr.rel (0) target = $region9
    $region8: #{epinet_forward_lanes.1} parent=1 // pred_region
      _
    $region9: #{epinet_forward_lanes.1} parent=1 // pred_fallthru
      _
    %v12 = vld [vmem:[%s0] sm:$0xff]
    %v13 = vld [vmem:[%s1] sm:$0xff]
    %v14 = vld [vmem:[%s1 + $0x8] sm:$0xff]
    %v15 = vld [vmem:[%s1 + $0x10] sm:$0xff]
    %17 = vset.pattern.permute.xlu0 16
    %18 = vperm.xlu0 %17, %v13
    %v19 = vpop.permute.xlu0 %18
    %22 = vset.pattern.permute.xlu0 16
    %23 = vperm.xlu0 %22, %v14
    %v24 = vpop.permute.xlu0 %23
    %v27 = vperm.slane %v12, 0
    %v28 = vperm.slane %v12, 1
    %v29 = vperm.slane %v12, 2
    %v30 = vperm.slane %v12, 3
    %v31 = vperm.slane %v12, 4
    %v32 = vperm.slane %v12, 5
    %v33 = vperm.slane %v12, 6
    %v34 = vperm.slane %v12, 7
    %v43 = vmul.f32 %v19, %v27
    %v44 = vmul.f32 %v19, %v28
    %v45 = vmul.f32 %v19, %v29
    %v46 = vmul.f32 %v19, %v30
    %v47 = vmul.f32 %v19, %v31
    %v48 = vmul.f32 %v19, %v32
    %v49 = vmul.f32 %v19, %v33
    %v50 = vmul.f32 %v19, %v34
    %v51 = vmul.f32 %v24, %v27
    %v52 = vmul.f32 %v24, %v28
    %v53 = vmul.f32 %v24, %v29
    %v54 = vmul.f32 %v24, %v30
    %v55 = vmul.f32 %v24, %v31
    %v56 = vmul.f32 %v24, %v32
    %v57 = vmul.f32 %v24, %v33
    %v58 = vmul.f32 %v24, %v34
    %59 = vset.pattern.permute.xlu0 17
    %60 = vperm.xlu0 %59, %v13
    %v61 = vpop.permute.xlu0 %60
    %63 = vset.pattern.permute.xlu0 17
    %64 = vperm.xlu0 %63, %v14
    %v65 = vpop.permute.xlu0 %64
    %v67 = vadd.f32 %v43, %v61
    %v68 = vadd.f32 %v44, %v61
    %v69 = vadd.f32 %v45, %v61
    %v70 = vadd.f32 %v46, %v61
    %v71 = vadd.f32 %v47, %v61
    %v72 = vadd.f32 %v48, %v61
    %v73 = vadd.f32 %v49, %v61
    %v74 = vadd.f32 %v50, %v61
    %v75 = vadd.f32 %v51, %v65
    %v76 = vadd.f32 %v52, %v65
    %v77 = vadd.f32 %v53, %v65
    %v78 = vadd.f32 %v54, %v65
    %v79 = vadd.f32 %v55, %v65
    %v80 = vadd.f32 %v56, %v65
    %v81 = vadd.f32 %v57, %v65
    %v82 = vadd.f32 %v58, %v65
    %v83 = vtanh.pop %v67
    %v84 = vtanh.pop %v68
    %v85 = vtanh.pop %v69
    %v86 = vtanh.pop %v70
    %v87 = vtanh.pop %v71
    %v88 = vtanh.pop %v72
    %v89 = vtanh.pop %v73
    %v90 = vtanh.pop %v74
    %v91 = vtanh.pop %v75
    %v92 = vtanh.pop %v76
    %v93 = vtanh.pop %v77
    %v94 = vtanh.pop %v78
    %v95 = vtanh.pop %v79
    %v96 = vtanh.pop %v80
    %v97 = vtanh.pop %v81
    %v98 = vtanh.pop %v82
    %99 = vset.pattern.permute.xlu0 18
    %100 = vperm.xlu0 %99, %v13
    %v101 = vpop.permute.xlu0 %100
    %103 = vset.pattern.permute.xlu0 18
    %104 = vperm.xlu0 %103, %v14
    %v105 = vpop.permute.xlu0 %104
    %vm107 = vcmask 130048
    %v108 = vsel %vm107, %v13, 0
    %v110 = vsel %vm107, %v14, 0
    %112 = vmatpush.msra.mxu0 0.0
    %113 = vmatpush.msra.mxu0 0.0
    %114 = vmatpush.msra.mxu0 0.0
    %115 = vmatpush.msra.mxu0 0.0
    %116 = vmatpush.msra.mxu0 0.0
    %117 = vmatpush.msra.mxu0 0.0
    %118 = vmatpush.msra.mxu0 0.0
    %119 = vmatpush.msra.mxu0 0.0
    %120 = vmatpush.msra.mxu0 0.0
    %121 = vmatpush.msra.mxu0 0.0
    %122 = vmatpush.msra.mxu0 0.0
    %123 = vmatpush.msra.mxu0 0.0
    %124 = vmatpush.msra.mxu0 0.0
    %125 = vmatpush.msra.mxu0 0.0
    %126 = vmatpush.msra.mxu0 %v91
    %127 = vmatpush.msra.mxu0 %v83
    %128 = vmatmul.f32.gmra.mxu0 %v108
    %v129 = vpop.f32.mrf.mxu0
    %v130 = vadd.f32 %v101, %v129
    %131 = vmatmul.f32.gmra.mxu0 %v110
    %v132 = vpop.f32.mrf.mxu0
    %v133 = vadd.f32 %v105, %v132
    %134 = vdwg.mxu0
    %135 = vmatpush.msra.mxu0 0.0
    %136 = vmatpush.msra.mxu0 0.0
    %137 = vmatpush.msra.mxu0 0.0
    %138 = vmatpush.msra.mxu0 0.0
    %139 = vmatpush.msra.mxu0 0.0
    %140 = vmatpush.msra.mxu0 0.0
    %141 = vmatpush.msra.mxu0 0.0
    %142 = vmatpush.msra.mxu0 0.0
    %143 = vmatpush.msra.mxu0 0.0
    %144 = vmatpush.msra.mxu0 0.0
    %145 = vmatpush.msra.mxu0 0.0
    %146 = vmatpush.msra.mxu0 0.0
    %147 = vmatpush.msra.mxu0 0.0
    %148 = vmatpush.msra.mxu0 0.0
    %149 = vmatpush.msra.mxu0 %v92
    %150 = vmatpush.msra.mxu0 %v84
    %151 = vmatmul.f32.gmra.mxu0 %v108
    %v152 = vpop.f32.mrf.mxu0
    %v153 = vadd.f32 %v101, %v152
    %154 = vmatmul.f32.gmra.mxu0 %v110
    %v155 = vpop.f32.mrf.mxu0
    %v156 = vadd.f32 %v105, %v155
    %157 = vdwg.mxu0
    %158 = vmatpush.msra.mxu0 0.0
    %159 = vmatpush.msra.mxu0 0.0
    %160 = vmatpush.msra.mxu0 0.0
    %161 = vmatpush.msra.mxu0 0.0
    %162 = vmatpush.msra.mxu0 0.0
    %163 = vmatpush.msra.mxu0 0.0
    %164 = vmatpush.msra.mxu0 0.0
    %165 = vmatpush.msra.mxu0 0.0
    %166 = vmatpush.msra.mxu0 0.0
    %167 = vmatpush.msra.mxu0 0.0
    %168 = vmatpush.msra.mxu0 0.0
    %169 = vmatpush.msra.mxu0 0.0
    %170 = vmatpush.msra.mxu0 0.0
    %171 = vmatpush.msra.mxu0 0.0
    %172 = vmatpush.msra.mxu0 %v93
    %173 = vmatpush.msra.mxu0 %v85
    %174 = vmatmul.f32.gmra.mxu0 %v108
    %v175 = vpop.f32.mrf.mxu0
    %v176 = vadd.f32 %v101, %v175
    %177 = vmatmul.f32.gmra.mxu0 %v110
    %v178 = vpop.f32.mrf.mxu0
    %v179 = vadd.f32 %v105, %v178
    %180 = vdwg.mxu0
    %181 = vmatpush.msra.mxu0 0.0
    %182 = vmatpush.msra.mxu0 0.0
    %183 = vmatpush.msra.mxu0 0.0
    %184 = vmatpush.msra.mxu0 0.0
    %185 = vmatpush.msra.mxu0 0.0
    %186 = vmatpush.msra.mxu0 0.0
    %187 = vmatpush.msra.mxu0 0.0
    %188 = vmatpush.msra.mxu0 0.0
    %189 = vmatpush.msra.mxu0 0.0
    %190 = vmatpush.msra.mxu0 0.0
    %191 = vmatpush.msra.mxu0 0.0
    %192 = vmatpush.msra.mxu0 0.0
    %193 = vmatpush.msra.mxu0 0.0
    %194 = vmatpush.msra.mxu0 0.0
    %195 = vmatpush.msra.mxu0 %v94
    %196 = vmatpush.msra.mxu0 %v86
    %197 = vmatmul.f32.gmra.mxu0 %v108
    %v198 = vpop.f32.mrf.mxu0
    %v199 = vadd.f32 %v101, %v198
    %200 = vmatmul.f32.gmra.mxu0 %v110
    %v201 = vpop.f32.mrf.mxu0
    %v202 = vadd.f32 %v105, %v201
    %203 = vdwg.mxu0
    %204 = vmatpush.msra.mxu0 0.0
    %205 = vmatpush.msra.mxu0 0.0
    %206 = vmatpush.msra.mxu0 0.0
    %207 = vmatpush.msra.mxu0 0.0
    %208 = vmatpush.msra.mxu0 0.0
    %209 = vmatpush.msra.mxu0 0.0
    %210 = vmatpush.msra.mxu0 0.0
    %211 = vmatpush.msra.mxu0 0.0
    %212 = vmatpush.msra.mxu0 0.0
    %213 = vmatpush.msra.mxu0 0.0
    %214 = vmatpush.msra.mxu0 0.0
    %215 = vmatpush.msra.mxu0 0.0
    %216 = vmatpush.msra.mxu0 0.0
    %217 = vmatpush.msra.mxu0 0.0
    %218 = vmatpush.msra.mxu0 %v95
    %219 = vmatpush.msra.mxu0 %v87
    %220 = vmatmul.f32.gmra.mxu0 %v108
    %v221 = vpop.f32.mrf.mxu0
    %v222 = vadd.f32 %v101, %v221
    %223 = vmatmul.f32.gmra.mxu0 %v110
    %v224 = vpop.f32.mrf.mxu0
    %v225 = vadd.f32 %v105, %v224
    %226 = vdwg.mxu0
    %227 = vmatpush.msra.mxu0 0.0
    %228 = vmatpush.msra.mxu0 0.0
    %229 = vmatpush.msra.mxu0 0.0
    %230 = vmatpush.msra.mxu0 0.0
    %231 = vmatpush.msra.mxu0 0.0
    %232 = vmatpush.msra.mxu0 0.0
    %233 = vmatpush.msra.mxu0 0.0
    %234 = vmatpush.msra.mxu0 0.0
    %235 = vmatpush.msra.mxu0 0.0
    %236 = vmatpush.msra.mxu0 0.0
    %237 = vmatpush.msra.mxu0 0.0
    %238 = vmatpush.msra.mxu0 0.0
    %239 = vmatpush.msra.mxu0 0.0
    %240 = vmatpush.msra.mxu0 0.0
    %241 = vmatpush.msra.mxu0 %v96
    %242 = vmatpush.msra.mxu0 %v88
    %243 = vmatmul.f32.gmra.mxu0 %v108
    %v244 = vpop.f32.mrf.mxu0
    %v245 = vadd.f32 %v101, %v244
    %246 = vmatmul.f32.gmra.mxu0 %v110
    %v247 = vpop.f32.mrf.mxu0
    %v248 = vadd.f32 %v105, %v247
    %249 = vdwg.mxu0
    %250 = vmatpush.msra.mxu0 0.0
    %251 = vmatpush.msra.mxu0 0.0
    %252 = vmatpush.msra.mxu0 0.0
    %253 = vmatpush.msra.mxu0 0.0
    %254 = vmatpush.msra.mxu0 0.0
    %255 = vmatpush.msra.mxu0 0.0
    %256 = vmatpush.msra.mxu0 0.0
    %257 = vmatpush.msra.mxu0 0.0
    %258 = vmatpush.msra.mxu0 0.0
    %259 = vmatpush.msra.mxu0 0.0
    %260 = vmatpush.msra.mxu0 0.0
    %261 = vmatpush.msra.mxu0 0.0
    %262 = vmatpush.msra.mxu0 0.0
    %263 = vmatpush.msra.mxu0 0.0
    %264 = vmatpush.msra.mxu0 %v97
    %265 = vmatpush.msra.mxu0 %v89
    %266 = vmatmul.f32.gmra.mxu0 %v108
    %v267 = vpop.f32.mrf.mxu0
    %v268 = vadd.f32 %v101, %v267
    %269 = vmatmul.f32.gmra.mxu0 %v110
    %v270 = vpop.f32.mrf.mxu0
    %v271 = vadd.f32 %v105, %v270
    %272 = vdwg.mxu0
    %273 = vmatpush.msra.mxu0 0.0
    %274 = vmatpush.msra.mxu0 0.0
    %275 = vmatpush.msra.mxu0 0.0
    %276 = vmatpush.msra.mxu0 0.0
    %277 = vmatpush.msra.mxu0 0.0
    %278 = vmatpush.msra.mxu0 0.0
    %279 = vmatpush.msra.mxu0 0.0
    %280 = vmatpush.msra.mxu0 0.0
    %281 = vmatpush.msra.mxu0 0.0
    %282 = vmatpush.msra.mxu0 0.0
    %283 = vmatpush.msra.mxu0 0.0
    %284 = vmatpush.msra.mxu0 0.0
    %285 = vmatpush.msra.mxu0 0.0
    %286 = vmatpush.msra.mxu0 0.0
    %287 = vmatpush.msra.mxu0 %v98
    %288 = vmatpush.msra.mxu0 %v90
    %289 = vmatmul.f32.gmra.mxu0 %v108
    %v290 = vpop.f32.mrf.mxu0
    %v291 = vadd.f32 %v101, %v290
    %292 = vmatmul.f32.gmra.mxu0 %v110
    %v293 = vpop.f32.mrf.mxu0
    %v294 = vadd.f32 %v105, %v293
    %295 = vdwg.mxu0
    %v296 = vtanh.pop %v130
    %v297 = vtanh.pop %v153
    %v298 = vtanh.pop %v176
    %v299 = vtanh.pop %v199
    %v300 = vtanh.pop %v222
    %v301 = vtanh.pop %v245
    %v302 = vtanh.pop %v268
    %v303 = vtanh.pop %v291
    %v304 = vtanh.pop %v133
    %v305 = vtanh.pop %v156
    %v306 = vtanh.pop %v179
    %v307 = vtanh.pop %v202
    %v308 = vtanh.pop %v225
    %v309 = vtanh.pop %v248
    %v310 = vtanh.pop %v271
    %v311 = vtanh.pop %v294
    %312 = vset.pattern.permute.xlu0 19
    %313 = vperm.xlu0 %312, %v13
    %v314 = vpop.permute.xlu0 %313
    %v317 = vsel %vm107, %v15, 0
    %319 = vmatpush.msra.mxu0 0.0
    %320 = vmatpush.msra.mxu0 0.0
    %321 = vmatpush.msra.mxu0 0.0
    %322 = vmatpush.msra.mxu0 0.0
    %323 = vmatpush.msra.mxu0 0.0
    %324 = vmatpush.msra.mxu0 0.0
    %325 = vmatpush.msra.mxu0 0.0
    %326 = vmatpush.msra.mxu0 0.0
    %327 = vmatpush.msra.mxu0 0.0
    %328 = vmatpush.msra.mxu0 0.0
    %329 = vmatpush.msra.mxu0 0.0
    %330 = vmatpush.msra.mxu0 0.0
    %331 = vmatpush.msra.mxu0 0.0
    %332 = vmatpush.msra.mxu0 0.0
    %333 = vmatpush.msra.mxu0 %v304
    %334 = vmatpush.msra.mxu0 %v296
    %335 = vmatmul.f32.gmra.mxu0 %v317
    %v336 = vpop.f32.mrf.mxu0
    %v337 = vadd.f32 %v314, %v336
    %338 = vdwg.mxu0
    %339 = vmatpush.msra.mxu0 0.0
    %340 = vmatpush.msra.mxu0 0.0
    %341 = vmatpush.msra.mxu0 0.0
    %342 = vmatpush.msra.mxu0 0.0
    %343 = vmatpush.msra.mxu0 0.0
    %344 = vmatpush.msra.mxu0 0.0
    %345 = vmatpush.msra.mxu0 0.0
    %346 = vmatpush.msra.mxu0 0.0
    %347 = vmatpush.msra.mxu0 0.0
    %348 = vmatpush.msra.mxu0 0.0
    %349 = vmatpush.msra.mxu0 0.0
    %350 = vmatpush.msra.mxu0 0.0
    %351 = vmatpush.msra.mxu0 0.0
    %352 = vmatpush.msra.mxu0 0.0
    %353 = vmatpush.msra.mxu0 %v305
    %354 = vmatpush.msra.mxu0 %v297
    %355 = vmatmul.f32.gmra.mxu0 %v317
    %v356 = vpop.f32.mrf.mxu0
    %v357 = vadd.f32 %v314, %v356
    %358 = vdwg.mxu0
    %359 = vmatpush.msra.mxu0 0.0
    %360 = vmatpush.msra.mxu0 0.0
    %361 = vmatpush.msra.mxu0 0.0
    %362 = vmatpush.msra.mxu0 0.0
    %363 = vmatpush.msra.mxu0 0.0
    %364 = vmatpush.msra.mxu0 0.0
    %365 = vmatpush.msra.mxu0 0.0
    %366 = vmatpush.msra.mxu0 0.0
    %367 = vmatpush.msra.mxu0 0.0
    %368 = vmatpush.msra.mxu0 0.0
    %369 = vmatpush.msra.mxu0 0.0
    %370 = vmatpush.msra.mxu0 0.0
    %371 = vmatpush.msra.mxu0 0.0
    %372 = vmatpush.msra.mxu0 0.0
    %373 = vmatpush.msra.mxu0 %v306
    %374 = vmatpush.msra.mxu0 %v298
    %375 = vmatmul.f32.gmra.mxu0 %v317
    %v376 = vpop.f32.mrf.mxu0
    %v377 = vadd.f32 %v314, %v376
    %378 = vdwg.mxu0
    %379 = vmatpush.msra.mxu0 0.0
    %380 = vmatpush.msra.mxu0 0.0
    %381 = vmatpush.msra.mxu0 0.0
    %382 = vmatpush.msra.mxu0 0.0
    %383 = vmatpush.msra.mxu0 0.0
    %384 = vmatpush.msra.mxu0 0.0
    %385 = vmatpush.msra.mxu0 0.0
    %386 = vmatpush.msra.mxu0 0.0
    %387 = vmatpush.msra.mxu0 0.0
    %388 = vmatpush.msra.mxu0 0.0
    %389 = vmatpush.msra.mxu0 0.0
    %390 = vmatpush.msra.mxu0 0.0
    %391 = vmatpush.msra.mxu0 0.0
    %392 = vmatpush.msra.mxu0 0.0
    %393 = vmatpush.msra.mxu0 %v307
    %394 = vmatpush.msra.mxu0 %v299
    %395 = vmatmul.f32.gmra.mxu0 %v317
    %v396 = vpop.f32.mrf.mxu0
    %v397 = vadd.f32 %v314, %v396
    %398 = vdwg.mxu0
    %399 = vmatpush.msra.mxu0 0.0
    %400 = vmatpush.msra.mxu0 0.0
    %401 = vmatpush.msra.mxu0 0.0
    %402 = vmatpush.msra.mxu0 0.0
    %403 = vmatpush.msra.mxu0 0.0
    %404 = vmatpush.msra.mxu0 0.0
    %405 = vmatpush.msra.mxu0 0.0
    %406 = vmatpush.msra.mxu0 0.0
    %407 = vmatpush.msra.mxu0 0.0
    %408 = vmatpush.msra.mxu0 0.0
    %409 = vmatpush.msra.mxu0 0.0
    %410 = vmatpush.msra.mxu0 0.0
    %411 = vmatpush.msra.mxu0 0.0
    %412 = vmatpush.msra.mxu0 0.0
    %413 = vmatpush.msra.mxu0 %v308
    %414 = vmatpush.msra.mxu0 %v300
    %415 = vmatmul.f32.gmra.mxu0 %v317
    %v416 = vpop.f32.mrf.mxu0
    %v417 = vadd.f32 %v314, %v416
    %418 = vdwg.mxu0
    %419 = vmatpush.msra.mxu0 0.0
    %420 = vmatpush.msra.mxu0 0.0
    %421 = vmatpush.msra.mxu0 0.0
    %422 = vmatpush.msra.mxu0 0.0
    %423 = vmatpush.msra.mxu0 0.0
    %424 = vmatpush.msra.mxu0 0.0
    %425 = vmatpush.msra.mxu0 0.0
    %426 = vmatpush.msra.mxu0 0.0
    %427 = vmatpush.msra.mxu0 0.0
    %428 = vmatpush.msra.mxu0 0.0
    %429 = vmatpush.msra.mxu0 0.0
    %430 = vmatpush.msra.mxu0 0.0
    %431 = vmatpush.msra.mxu0 0.0
    %432 = vmatpush.msra.mxu0 0.0
    %433 = vmatpush.msra.mxu0 %v309
    %434 = vmatpush.msra.mxu0 %v301
    %435 = vmatmul.f32.gmra.mxu0 %v317
    %v436 = vpop.f32.mrf.mxu0
    %v437 = vadd.f32 %v314, %v436
    %438 = vdwg.mxu0
    %439 = vmatpush.msra.mxu0 0.0
    %440 = vmatpush.msra.mxu0 0.0
    %441 = vmatpush.msra.mxu0 0.0
    %442 = vmatpush.msra.mxu0 0.0
    %443 = vmatpush.msra.mxu0 0.0
    %444 = vmatpush.msra.mxu0 0.0
    %445 = vmatpush.msra.mxu0 0.0
    %446 = vmatpush.msra.mxu0 0.0
    %447 = vmatpush.msra.mxu0 0.0
    %448 = vmatpush.msra.mxu0 0.0
    %449 = vmatpush.msra.mxu0 0.0
    %450 = vmatpush.msra.mxu0 0.0
    %451 = vmatpush.msra.mxu0 0.0
    %452 = vmatpush.msra.mxu0 0.0
    %453 = vmatpush.msra.mxu0 %v310
    %454 = vmatpush.msra.mxu0 %v302
    %455 = vmatmul.f32.gmra.mxu0 %v317
    %v456 = vpop.f32.mrf.mxu0
    %v457 = vadd.f32 %v314, %v456
    %458 = vdwg.mxu0
    %459 = vmatpush.msra.mxu0 0.0
    %460 = vmatpush.msra.mxu0 0.0
    %461 = vmatpush.msra.mxu0 0.0
    %462 = vmatpush.msra.mxu0 0.0
    %463 = vmatpush.msra.mxu0 0.0
    %464 = vmatpush.msra.mxu0 0.0
    %465 = vmatpush.msra.mxu0 0.0
    %466 = vmatpush.msra.mxu0 0.0
    %467 = vmatpush.msra.mxu0 0.0
    %468 = vmatpush.msra.mxu0 0.0
    %469 = vmatpush.msra.mxu0 0.0
    %470 = vmatpush.msra.mxu0 0.0
    %471 = vmatpush.msra.mxu0 0.0
    %472 = vmatpush.msra.mxu0 0.0
    %473 = vmatpush.msra.mxu0 %v311
    %474 = vmatpush.msra.mxu0 %v303
    %475 = vmatmul.f32.gmra.mxu0 %v317
    %v476 = vpop.f32.mrf.mxu0
    %v477 = vadd.f32 %v314, %v476
    %478 = vdwg.mxu0
    %v479 = vmul.f32 %v337, 0.5
    %v480 = vmul.f32 %v357, 0.5
    %v481 = vmul.f32 %v377, 0.5
    %v482 = vmul.f32 %v397, 0.5
    %v483 = vmul.f32 %v417, 0.5
    %v484 = vmul.f32 %v437, 0.5
    %v485 = vmul.f32 %v457, 0.5
    %v486 = vmul.f32 %v477, 0.5
    %v487 = vtanh.pop %v479
    %v488 = vtanh.pop %v480
    %v489 = vtanh.pop %v481
    %v490 = vtanh.pop %v482
    %v491 = vtanh.pop %v483
    %v492 = vtanh.pop %v484
    %v493 = vtanh.pop %v485
    %v494 = vtanh.pop %v486
    %v495 = vmul.f32 %v487, 0.5
    %v496 = vmul.f32 %v488, 0.5
    %v497 = vmul.f32 %v489, 0.5
    %v498 = vmul.f32 %v490, 0.5
    %v499 = vmul.f32 %v491, 0.5
    %v500 = vmul.f32 %v492, 0.5
    %v501 = vmul.f32 %v493, 0.5
    %v502 = vmul.f32 %v494, 0.5
    %v503 = vadd.f32 %v495, 0.5
    %v504 = vadd.f32 %v496, 0.5
    %v505 = vadd.f32 %v497, 0.5
    %v506 = vadd.f32 %v498, 0.5
    %v507 = vadd.f32 %v499, 0.5
    %v508 = vadd.f32 %v500, 0.5
    %v509 = vadd.f32 %v501, 0.5
    %v510 = vadd.f32 %v502, 0.5
    %511 = vst [vmem:[#allocation2] sm:$0xff] %v503
    %512 = vst [vmem:[#allocation2 + $0x8] sm:$0xff] %v504
    %513 = vst [vmem:[#allocation2 + $0x10] sm:$0xff] %v505
    %514 = vst [vmem:[#allocation2 + $0x18] sm:$0xff] %v506
    %515 = vst [vmem:[#allocation2 + $0x20] sm:$0xff] %v507
    %516 = vst [vmem:[#allocation2 + $0x28] sm:$0xff] %v508
    %517 = vst [vmem:[#allocation2 + $0x30] sm:$0xff] %v509
    %vm518 = vcmask 850944
    %519 = vst.msk [vmem:[#allocation2 + $0x38] sm:$0xff] %vm518, %v510
    // Predicated region
    $region10: #{epinet_forward_lanes.1} parent=1 // pred_check
      _
    $region11: #{epinet_forward_lanes.1} parent=1 // pred_check_branch
      %521 = sbr.rel (0) target = $region13
    $region12: #{epinet_forward_lanes.1} parent=1 // pred_region
      %523 = vsyncadd [#allocation3], 0
      %s525 = sshll.u32 [#allocation2], 4
      %s526 = int_to_ptr.vmem [resolvable:$true] %s525
      %s527 = sshll.u32 %s2, 4
      %s528 = int_to_ptr.hbm [resolvable:$true] %s527
      %530 = dma.vmem_to_hbm [thread:$0]  %s526, 1024, %s528, [#allocation3]
    $region13: #{epinet_forward_lanes.1} parent=1 // pred_fallthru
      _
    // Predicated region
    $region14: #{epinet_forward_lanes.1} parent=1 // pred_check
      _
    $region15: #{epinet_forward_lanes.1} parent=1 // pred_check_branch
      %532 = sbr.rel (0) target = $region17
    $region16: #{epinet_forward_lanes.1} parent=1 // pred_region
      %534 = dma.done [#allocation3], 1024
    $region17: #{epinet_forward_lanes.1} parent=1 // pred_fallthru
      _
    %535 = vsyncpa [#allocation3], 1

</llo_original>
